<compile_context>
chip_gen: v7x
topology: tpu7x:2x2x1
jax: 0.10.0
libtpu: 0.0.40
codegen_flags: <defaults>
</compile_context>

<pallas_src>
import math

import jax
import jax.numpy as jnp
from jax import lax
from jax.experimental import pallas as pl
from jax.experimental.pallas import tpu as pltpu


def _round_up(x, m):
    return ((x + m - 1) // m) * m


def _linear_kernel_single_k(x_ref, w_ref, b_ref, o_ref):
    """Whole-K variant: one MXU pass per (tm, tn) tile, no scratch accumulator.

    x_ref : (tm, K)   activation tile
    w_ref : (tn, K)   weight tile, PyTorch (out_features, in_features) layout
    b_ref : (1, tn)   bias tile
    o_ref : (tm, tn)  output tile
    """
    xb = x_ref[...].astype(jnp.bfloat16)
    wb = w_ref[...].astype(jnp.bfloat16)
    acc = lax.dot_general(
        xb, wb,
        dimension_numbers=(((1,), (1,)), ((), ())),
        preferred_element_type=jnp.float32,
    )
    o_ref[...] = (acc + b_ref[...].astype(jnp.float32)).astype(o_ref.dtype)


def _linear_kernel_multi_k(x_ref, w_ref, b_ref, o_ref, acc_ref):
    """K-tiled variant: f32 VMEM accumulator persists across grid axis 2.

    x_ref  : (tm, tk)   activation tile
    w_ref  : (tn, tk)   weight tile, PyTorch (out_features, in_features) layout
    b_ref  : (1, tn)    bias tile
    o_ref  : (tm, tn)   output tile
    acc_ref: (tm, tn)   persistent f32 accumulator (VMEM scratch)
    """
    k = pl.program_id(2)

    @pl.when(k == 0)
    def _():
        acc_ref[...] = jnp.zeros_like(acc_ref)

    xb = x_ref[...].astype(jnp.bfloat16)
    wb = w_ref[...].astype(jnp.bfloat16)
    # y_tile += x_tile @ w_tile.T  (contract last dim of both; no transpose op)
    acc_ref[...] += lax.dot_general(
        xb, wb,
        dimension_numbers=(((1,), (1,)), ((), ())),
        preferred_element_type=jnp.float32,
    )

    @pl.when(k == pl.num_programs(2) - 1)
    def _():
        o_ref[...] = (acc_ref[...] + b_ref[...].astype(jnp.float32)).astype(o_ref.dtype)


def sparsechem_classification_forward(x, weight, bias, *,
                                      tm_max=512, tn_max=256, tk_max=1024):
    """y = x @ weight.T + bias   (nn.Linear.forward semantics)

    x:      (N, inplanes)            float32 (or bf16)
    weight: (num_classes, inplanes)  PyTorch layout -- NOT transposed on host
    bias:   (num_classes,)
    returns (N, num_classes)         float32
    """
    n, k_in = x.shape
    n_cls, k_w = weight.shape
    assert k_in == k_w, "weight in_features must match x feature dim"

    # Tile sizes: sublane-aligned M, lane-aligned (128-multiple) N and K.
    tm = min(tm_max, _round_up(n, 8))
    tn = min(tn_max, _round_up(n_cls, 128))
    tk = min(tk_max, _round_up(k_in, 128))

    m_pad = _round_up(n, tm)
    c_pad = _round_up(n_cls, tn)
    k_pad = _round_up(k_in, tk)

    # Zero-pad so padded K contributes nothing to the dot and padded class
    # columns stay zero (sliced off at the end).
    if (m_pad, k_pad) != (n, k_in):
        x = jnp.pad(x, ((0, m_pad - n), (0, k_pad - k_in)))
    if (c_pad, k_pad) != (n_cls, k_in):
        weight = jnp.pad(weight, ((0, c_pad - n_cls), (0, k_pad - k_in)))
    if c_pad != n_cls:
        bias = jnp.pad(bias, (0, c_pad - n_cls))
    bias2d = bias.reshape(1, c_pad)

    nk = k_pad // tk

    if nk == 1:
        # Single K tile: no accumulator needed, 2-D grid, straight store.
        grid = (m_pad // tm, c_pad // tn)
        grid_spec = pltpu.PrefetchScalarGridSpec(
            num_scalar_prefetch=0,
            grid=grid,
            in_specs=[
                pl.BlockSpec((tm, k_pad), lambda i, j: (i, 0)),   # activations
                pl.BlockSpec((tn, k_pad), lambda i, j: (j, 0)),   # weight (C,K)
                pl.BlockSpec((1, tn), lambda i, j: (0, j)),       # bias
            ],
            out_specs=pl.BlockSpec((tm, tn), lambda i, j: (i, j)),
        )
        kernel = _linear_kernel_single_k
        dim_sem = ("parallel", "parallel")
    else:
        grid = (m_pad // tm, c_pad // tn, nk)
        grid_spec = pltpu.PrefetchScalarGridSpec(
            num_scalar_prefetch=0,
            grid=grid,
            in_specs=[
                pl.BlockSpec((tm, tk), lambda i, j, k: (i, k)),   # activations
                pl.BlockSpec((tn, tk), lambda i, j, k: (j, k)),   # weight (C,K)
                pl.BlockSpec((1, tn), lambda i, j, k: (0, j)),    # bias
            ],
            out_specs=pl.BlockSpec((tm, tn), lambda i, j, k: (i, j)),
            scratch_shapes=[pltpu.VMEM((tm, tn), jnp.float32)],
        )
        kernel = _linear_kernel_multi_k
        dim_sem = ("parallel", "parallel", "arbitrary")

    out = pl.pallas_call(
        kernel,
        out_shape=jax.ShapeDtypeStruct((m_pad, c_pad), jnp.float32),
        grid_spec=grid_spec,
        compiler_params=pltpu.CompilerParams(dimension_semantics=dim_sem),
    )(x, weight, bias2d)

    return out[:n, :n_cls]


def init_linear_params(key, inplanes, num_classes):
    """Deterministic init mirroring nn.Linear's default (uniform +-1/sqrt(fan_in))."""
    kw, kb = jax.random.split(key)
    bound = 1.0 / math.sqrt(inplanes)
    weight = jax.random.uniform(
        kw, (num_classes, inplanes), jnp.float32, minval=-bound, maxval=bound
    )
    bias = jax.random.uniform(
        kb, (num_classes,), jnp.float32, minval=-bound, maxval=bound
    )
    return weight, bias


if __name__ == "__main__":
    key = jax.random.PRNGKey(0)
    k_x, k_p = jax.random.split(key)

    batch = 2
    inplanes = 32
    num_classes = 8

    x = jax.random.normal(k_x, (batch, inplanes), jnp.float32)
    weight, bias = init_linear_params(k_p, inplanes, num_classes)

    y = sparsechem_classification_forward(x, weight, bias)
    y = jax.block_until_ready(y)

    # Sanity check against plain-JAX reference of nn.Linear semantics.
    # Kernel uses bf16 MXU inputs with f32 accumulation -> loose tolerance vs f32 ref.
    y_ref = x @ weight.T + bias
    assert y.shape == (batch, num_classes)
    assert jnp.allclose(y, y_ref, atol=5e-2, rtol=5e-2), (
        f"max abs err {jnp.max(jnp.abs(y - y_ref))}"
    )

    print("KERNEL_OK")
</pallas_src>

<mosaic_0001>
module attributes {stable_mosaic.version = 11 : i64} {
  func.func @_linear_kernel_single_k(%arg0: i32, %arg1: i32, %arg2: memref<8x128xf32, #tpu.memory_space<vmem>>, %arg3: memref<128x128xf32, #tpu.memory_space<vmem>>, %arg4: memref<1x128xf32, #tpu.memory_space<vmem>>, %arg5: memref<8x128xf32, #tpu.memory_space<vmem>>) attributes {dimension_semantics = [#tpu.dimension_semantics<parallel>, #tpu.dimension_semantics<parallel>], iteration_bounds = array<i64: 1, 1>, scalar_prefetch = 0 : i64, scratch_operands = 0 : i64, tpu.core_type = #tpu.core_type<tc>, window_params = [{transform_indices = @transform_0, window_bounds = array<i64: 8, 128>}, {transform_indices = @transform_1, window_bounds = array<i64: 128, 128>}, {transform_indices = @transform_2, window_bounds = array<i64: 1, 128>}, {transform_indices = @transform_3, window_bounds = array<i64: 8, 128>}]} {
    %c0 = arith.constant 0 : index
    %c0_0 = arith.constant 0 : index
    %0 = vector.load %arg2[%c0, %c0_0] : memref<8x128xf32, #tpu.memory_space<vmem>>, vector<8x128xf32>
    %1 = arith.truncf %0 : vector<8x128xf32> to vector<8x128xbf16>
    %c0_1 = arith.constant 0 : index
    %c0_2 = arith.constant 0 : index
    %2 = vector.load %arg3[%c0_1, %c0_2] : memref<128x128xf32, #tpu.memory_space<vmem>>, vector<128x128xf32>
    %3 = arith.truncf %2 : vector<128x128xf32> to vector<128x128xbf16>
    %cst = arith.constant dense<0.000000e+00> : vector<8x128xf32>
    %4 = tpu.matmul %1, %3, %cst {dimension_numbers = #tpu.dot_dimension_numbers<[1], [1], [0], [0], [0, 0, 1, 0], [], []>} : vector<8x128xbf16>, vector<128x128xbf16>, vector<8x128xf32> -> vector<8x128xf32>
    %c0_3 = arith.constant 0 : index
    %c0_4 = arith.constant 0 : index
    %5 = vector.load %arg4[%c0_3, %c0_4] : memref<1x128xf32, #tpu.memory_space<vmem>>, vector<1x128xf32>
    %6 = vector.broadcast %5 : vector<1x128xf32> to vector<8x128xf32>
    %7 = arith.addf %4, %6 : vector<8x128xf32>
    %c0_5 = arith.constant 0 : index
    %c0_6 = arith.constant 0 : index
    %8 = vector.load %arg5[%c0_5, %c0_6] : memref<8x128xf32, #tpu.memory_space<vmem>>, vector<8x128xf32>
    tpu.vector_store %arg5[%c0_5, %c0_6], %7 {strides = array<i32>} : memref<8x128xf32, #tpu.memory_space<vmem>>, vector<8x128xf32>,
    return
  }
  func.func @transform_0(%arg0: i32, %arg1: i32) -> (i32, i32) {
    %c0_i32 = arith.constant 0 : i32
    %c0_i32_0 = arith.constant 0 : i32
    return %arg0, %c0_i32 : i32, i32
  }
  func.func @transform_1(%arg0: i32, %arg1: i32) -> (i32, i32) {
    %c0_i32 = arith.constant 0 : i32
    %c0_i32_0 = arith.constant 0 : i32
    return %arg1, %c0_i32 : i32, i32
  }
  func.func @transform_2(%arg0: i32, %arg1: i32) -> (i32, i32) {
    %c0_i32 = arith.constant 0 : i32
    %c0_i32_0 = arith.constant 0 : i32
    return %c0_i32, %arg1 : i32, i32
  }
  func.func @transform_3(%arg0: i32, %arg1: i32) -> (i32, i32) {
    %c0_i32 = arith.constant 0 : i32
    return %arg0, %arg1 : i32, i32
  }
}

</mosaic_0001>

<llo_original>
// kernel: tpu_custom_call.1
$region0: #{tpu_custom_call.1}
  #allocation0 [shape = 'u32[]', space=smem, size = 0x4, offset = 0x4, fixed_abs, tag = 'smem constant byte address 0x4 - core index']
  #allocation1 [shape = 'u32[144,128]{1,0:T(1,128)}', space=vmem, size = 0x12000, scoped, tag = 'internal scratch']
  %s0 = inlined_call_operand.hbm [shape: f32[8,128], index: 0, kind: input, shape index: {}]
  %s1 = inlined_call_operand.hbm [shape: f32[128,128], index: 1, kind: input, shape index: {}]
  %s2 = inlined_call_operand.vmem [shape: f32[1,128], index: 2, kind: input, shape index: {}]
  %s3 = inlined_call_operand.hbm [shape: f32[8,128], index: 3, kind: output, shape index: {}]
  %s4 = sld [smem:[#allocation0]]
  $region30: #{tpu_custom_call.1} parent=0
    _
  %s6 = ssub.s32 1, %s4
  %s7 = scalar_select 0, %s6, %s4
  $region1: #{tpu_custom_call.1} parent=0
    #allocation2 [shape = 'u8[4096]{0}', space=vmem, size = 0x1000, scoped, tag = 'input window, operand 0, single buffered']
    #allocation3 [shape = 's32[1]{0}', space=sflag, size = 0x4, scoped, tag = 'scoped memory for tpu_custom_call.1']
    #allocation4 [shape = 's32[1]{0}', space=sflag, size = 0x4, scoped, tag = 'scoped memory for tpu_custom_call.1']
    #allocation5 [shape = 'u8[65536]{0}', space=vmem, size = 0x10000, scoped, tag = 'input window, operand 1, single buffered']
    #allocation6 [shape = 's32[1]{0}', space=sflag, size = 0x4, scoped, tag = 'scoped memory for tpu_custom_call.1']
    #allocation7 [shape = 'u8[4096]{0}', space=vmem, size = 0x1000, scoped, tag = 'output window, operand 0, single buffered']
    %8 = vsyncpa [#allocation3], 0
    %9 = vsyncpa [#allocation6], 0
    %10 = vsyncpa [#allocation4], 0
    // Predicated region
    $region2: #{tpu_custom_call.1} parent=1 // pred_check
      _
    $region3: #{tpu_custom_call.1} parent=1 // pred_check_branch
      %12 = sbr.rel (0) target = $region5
    $region4: #{tpu_custom_call.1} parent=1 // pred_region
      %s14 = ssub.s32 128, 128
      %15 = vsyncadd [#allocation3], %s14
      %s17 = sshll.u32 [#allocation2], 4
      %s18 = int_to_ptr.vmem [resolvable:$true] %s17
      %20 = dma.hbm_to_vmem [thread:$0]  %s0, 128, %s18, [#allocation3]
    $region5: #{tpu_custom_call.1} parent=1 // pred_fallthru
      _
    // Predicated region
    $region6: #{tpu_custom_call.1} parent=1 // pred_check
      _
    $region7: #{tpu_custom_call.1} parent=1 // pred_check_branch
      %22 = sbr.rel (0) target = $region9
    $region8: #{tpu_custom_call.1} parent=1 // pred_region
      %s24 = ssub.s32 2048, 2048
      %25 = vsyncadd [#allocation6], %s24
      %s26 = sshll.u32 [#allocation5], 4
      %s27 = int_to_ptr.vmem [resolvable:$true] %s26
      %32 = dma.hbm_to_vmem [thread:$0]  %s1, 2048, %s27, [#allocation6], 128, 128, 8
    $region9: #{tpu_custom_call.1} parent=1 // pred_fallthru
      _
    // Predicated region
    $region10: #{tpu_custom_call.1} parent=1 // pred_check
      _
    $region11: #{tpu_custom_call.1} parent=1 // pred_check_branch
      %34 = sbr.rel (0) target = $region13
    $region12: #{tpu_custom_call.1} parent=1 // pred_region
      _
    $region13: #{tpu_custom_call.1} parent=1 // pred_fallthru
      _
    // Predicated region
    $region14: #{tpu_custom_call.1} parent=1 // pred_check
      _
    $region15: #{tpu_custom_call.1} parent=1 // pred_check_branch
      %36 = sbr.rel (0) target = $region17
    $region16: #{tpu_custom_call.1} parent=1 // pred_region
      %37 = dma.done [#allocation3], 128
    $region17: #{tpu_custom_call.1} parent=1 // pred_fallthru
      _
    // Predicated region
    $region18: #{tpu_custom_call.1} parent=1 // pred_check
      _
    $region19: #{tpu_custom_call.1} parent=1 // pred_check_branch
      %39 = sbr.rel (0) target = $region21
    $region20: #{tpu_custom_call.1} parent=1 // pred_region
      %40 = dma.done [#allocation6], 2048
    $region21: #{tpu_custom_call.1} parent=1 // pred_fallthru
      _
    %v42 = vld [vmem:[#allocation2] sm:$0xff]
    %v43 = vpack.c.bf16 %v42, %v42
    %v44 = vld [vmem:[#allocation5] sm:$0xff]
    %v45 = vld [vmem:[#allocation5 + $0x8] sm:$0xff]
    %v46 = vld [vmem:[#allocation5 + $0x10] sm:$0xff]
    %v47 = vld [vmem:[#allocation5 + $0x18] sm:$0xff]
    %v48 = vld [vmem:[#allocation5 + $0x20] sm:$0xff]
    %v49 = vld [vmem:[#allocation5 + $0x28] sm:$0xff]
    %v50 = vld [vmem:[#allocation5 + $0x30] sm:$0xff]
    %v51 = vld [vmem:[#allocation5 + $0x38] sm:$0xff]
    %v52 = vld [vmem:[#allocation5 + $0x40] sm:$0xff]
    %v53 = vld [vmem:[#allocation5 + $0x48] sm:$0xff]
    %v54 = vld [vmem:[#allocation5 + $0x50] sm:$0xff]
    %v55 = vld [vmem:[#allocation5 + $0x58] sm:$0xff]
    %v56 = vld [vmem:[#allocation5 + $0x60] sm:$0xff]
    %v57 = vld [vmem:[#allocation5 + $0x68] sm:$0xff]
    %v58 = vld [vmem:[#allocation5 + $0x70] sm:$0xff]
    %v59 = vld [vmem:[#allocation5 + $0x78] sm:$0xff]
    %v60 = vpack.c.bf16 %v45, %v44
    %v61 = vpack.c.bf16 %v47, %v46
    %v62 = vpack.c.bf16 %v49, %v48
    %v63 = vpack.c.bf16 %v51, %v50
    %v64 = vpack.c.bf16 %v53, %v52
    %v65 = vpack.c.bf16 %v55, %v54
    %v66 = vpack.c.bf16 %v57, %v56
    %v67 = vpack.c.bf16 %v59, %v58
    %v68 = vld [vmem:[%s2] sm:$0x1]
    %v70 = vlaneseq
    %v71 = vshrl.u32 %v70, 7
    %v72 = vsub.s32 0, %v71
    %v73 = vrot.slane %v68, %v72
    %75 = vmatprep.subr.bf16.mxu0 0
    %76 = vmatpush1.bf16.xpose.msra.mxu0 %v60
    %77 = vmatprep.subr.bf16.mxu0 0
    %78 = vmatpush1.bf16.xpose.msra.mxu0 %v61
    %79 = vmatprep.subr.bf16.mxu0 0
    %80 = vmatpush1.bf16.xpose.msra.mxu0 %v62
    %81 = vmatprep.subr.bf16.mxu0 0
    %82 = vmatpush1.bf16.xpose.msra.mxu0 %v63
    %83 = vmatprep.subr.bf16.mxu0 0
    %84 = vmatpush1.bf16.xpose.msra.mxu0 %v64
    %85 = vmatprep.subr.bf16.mxu0 0
    %86 = vmatpush1.bf16.xpose.msra.mxu0 %v65
    %87 = vmatprep.subr.bf16.mxu0 0
    %88 = vmatpush1.bf16.xpose.msra.mxu0 %v66
    %89 = vmatprep.subr.bf16.mxu0 0
    %90 = vmatpush1.bf16.xpose.msra.mxu0 %v67
    %91 = vmatprep.subr.bf16.mxu0 0
    %92 = vmatpush1.bf16.xpose.msra.mxu0 0
    %93 = vmatprep.subr.bf16.mxu0 0
    %94 = vmatpush1.bf16.xpose.msra.mxu0 0
    %95 = vmatprep.subr.bf16.mxu0 0
    %96 = vmatpush1.bf16.xpose.msra.mxu0 0
    %97 = vmatprep.subr.bf16.mxu0 0
    %98 = vmatpush1.bf16.xpose.msra.mxu0 0
    %99 = vmatprep.subr.bf16.mxu0 0
    %100 = vmatpush1.bf16.xpose.msra.mxu0 0
    %101 = vmatprep.subr.bf16.mxu0 0
    %102 = vmatpush1.bf16.xpose.msra.mxu0 0
    %103 = vmatprep.subr.bf16.mxu0 0
    %104 = vmatpush1.bf16.xpose.msra.mxu0 0
    %105 = vmatprep.subr.bf16.mxu0 0
    %106 = vmatpush1.bf16.xpose.msra.mxu0 0
    %107 = vmatprep.mubr.bf16.mxu0 0
    %108 = vmatmul.mubr.bf16.gmra.mrb[0].mxu0 %v43
    %v109 = vpop.f32.mrb[0].mxu0
    %v110 = vadd.f32 %v73, %v109
    %v111 = vpop.f32.mrb[0].mxu0
    %v112 = vpop.f32.mrb[0].mxu0
    %v113 = vpop.f32.mrb[0].mxu0
    %114 = vdwg.mxu0
    %115 = vst [vmem:[#allocation7] sm:$0xff] %v110
    // Predicated region
    $region22: #{tpu_custom_call.1} parent=1 // pred_check
      _
    $region23: #{tpu_custom_call.1} parent=1 // pred_check_branch
      %117 = sbr.rel (0) target = $region25
    $region24: #{tpu_custom_call.1} parent=1 // pred_region
      %s119 = ssub.s32 128, 128
      %120 = vsyncadd [#allocation4], %s119
      %s122 = sshll.u32 [#allocation7], 4
      %s123 = int_to_ptr.vmem [resolvable:$true] %s122
      %125 = dma.vmem_to_hbm [thread:$0]  %s123, 128, %s3, [#allocation4]
    $region25: #{tpu_custom_call.1} parent=1 // pred_fallthru
      _
    // Predicated region
    $region26: #{tpu_custom_call.1} parent=1 // pred_check
      _
    $region27: #{tpu_custom_call.1} parent=1 // pred_check_branch
      %127 = sbr.rel (0) target = $region29
    $region28: #{tpu_custom_call.1} parent=1 // pred_region
      %128 = dma.done [#allocation4], 128
    $region29: #{tpu_custom_call.1} parent=1 // pred_fallthru
      _
    %129 = vsyncpa [#allocation3], 1
    %130 = vsyncpa [#allocation6], 1
    %131 = vsyncpa [#allocation4], 1

</llo_original>
